<compile_context>
chip_gen: v6e
topology: v6e:2x2x1
jax: 0.10.0
libtpu: 0.0.40
codegen_flags: <defaults>
</compile_context>

<pallas_src>
import jax
import jax.numpy as jnp
from jax.experimental import pallas as pl
from jax.experimental.pallas import tpu as pltpu

K_IN = 784           # contraction dim of layer 1 (kept unpadded; 784 = 49*16)
N1, N2 = 256, 128
N3 = 10
N3_PAD = 128         # lane-dense logits slab; sliced back to 10 in the wrapper
TB_MAX = 1024        # batch tile cap (~8 MiB VMEM double-buffered at 1024)


def _round_up(n, m):
    return ((n + m - 1) // m) * m


def _pick_batch_tile(B):
    """Pick TB so batch-pad waste is bounded (<= ~12.5%)."""
    B8 = _round_up(B, 8)
    if B8 <= TB_MAX:
        return B8, B8                      # single tile, zero waste
    for tb in (1024, 512, 256, 128):
        b_pad = _round_up(B8, tb)
        if (b_pad - B8) * 8 <= B8:         # <= 12.5% padded rows
            return tb, b_pad
    return 128, _round_up(B8, 128)


def _mlp_kernel(x_ref, w1_ref, b1_ref, w2_ref, b2_ref, w3_ref, b3_ref, o_ref):
    # In-VMEM f32 -> bf16 cast of the activation tile (VPU filler under MXU slack).
    x = x_ref[...].astype(jnp.bfloat16)
    # Layer 1: (TB, 784)bf16 @ (784, 256)bf16 -> f32 acc; bias + ReLU in f32.
    h1 = jnp.dot(x, w1_ref[...], preferred_element_type=jnp.float32)
    h1 = jnp.maximum(h1 + b1_ref[...], 0.0).astype(jnp.bfloat16)
    # Layer 2: (TB, 256) @ (256, 128) -> f32; bias + ReLU in f32.
    h2 = jnp.dot(h1, w2_ref[...], preferred_element_type=jnp.float32)
    h2 = jnp.maximum(h2 + b2_ref[...], 0.0).astype(jnp.bfloat16)
    # Layer 3: (TB, 128) @ (128, 128-padded) + bias -> bf16 lane-dense logits slab.
    o_ref[...] = (
        jnp.dot(h2, w3_ref[...], preferred_element_type=jnp.float32) + b3_ref[...]
    ).astype(o_ref.dtype)


def prepare_params(params):
    """One-time conversion: bf16 matmul weights, f32 biases, w3/b3 N-padded to 128."""
    return {
        "w1": params["w1"].astype(jnp.bfloat16),                                   # (784, 256)
        "b1": params["b1"].astype(jnp.float32),                                    # (1, 256)
        "w2": params["w2"].astype(jnp.bfloat16),                                   # (256, 128)
        "b2": params["b2"].astype(jnp.float32),                                    # (1, 128)
        "w3": jnp.pad(params["w3"].astype(jnp.bfloat16), ((0, 0), (0, N3_PAD - N3))),
        "b3": jnp.pad(params["b3"].astype(jnp.float32), ((0, 0), (0, N3_PAD - N3))),
    }


@jax.jit
def simple_mlp_forward(x, prep):
    """x: anything that flattens to (-1, 784); prep: output of prepare_params."""
    x2d = x.reshape(-1, K_IN).astype(jnp.float32)
    B = x2d.shape[0]

    TB, B_pad = _pick_batch_tile(B)
    if B_pad != B:
        x2d = jnp.pad(x2d, ((0, B_pad - B), (0, 0)))

    grid = (B_pad // TB,)

    flops = 2 * B_pad * (K_IN * N1 + N1 * N2 + N2 * N3_PAD)
    bytes_accessed = (
        B_pad * K_IN * 4                       # x read (f32, unpadded K)
        + prep["w1"].size * 2 + prep["w2"].size * 2 + prep["w3"].size * 2
        + prep["b1"].size * 4 + prep["b2"].size * 4 + prep["b3"].size * 4
        + B_pad * N3_PAD * 2                   # bf16 logits writeback
    )

    out = pl.pallas_call(
        _mlp_kernel,
        out_shape=jax.ShapeDtypeStruct((B_pad, N3_PAD), jnp.bfloat16),
        grid=grid,
        in_specs=[
            pl.BlockSpec((TB, K_IN),   lambda i: (i, 0)),   # x: tiled over batch (784 = full dim)
            pl.BlockSpec((K_IN, N1),   lambda i: (0, 0)),   # weights/biases: VMEM-resident
            pl.BlockSpec((1, N1),      lambda i: (0, 0)),
            pl.BlockSpec((N1, N2),     lambda i: (0, 0)),
            pl.BlockSpec((1, N2),      lambda i: (0, 0)),
            pl.BlockSpec((N2, N3_PAD), lambda i: (0, 0)),
            pl.BlockSpec((1, N3_PAD),  lambda i: (0, 0)),
        ],
        out_specs=pl.BlockSpec((TB, N3_PAD), lambda i: (i, 0)),
        compiler_params=pltpu.CompilerParams(
            # "parallel" lets the batch axis shard across v7x's two TensorCores.
            dimension_semantics=("parallel",),
            vmem_limit_bytes=32 * 1024 * 1024,
        ),
        cost_estimate=pl.CostEstimate(
            flops=flops, transcendentals=0, bytes_accessed=bytes_accessed),
    )(x2d, prep["w1"], prep["b1"], prep["w2"], prep["b2"], prep["w3"], prep["b3"])

    # Strip batch padding + lane padding; restore f32 logits for the caller.
    return out[:B, :N3].astype(jnp.float32)


def init_params(key):
    """Deterministic init mimicking nn.Linear's default U(-1/sqrt(fan_in), +)."""
    dims = [(784, 256), (256, 128), (128, 10)]
    params = {}
    for i, (fan_in, fan_out) in enumerate(dims, start=1):
        key, kw, kb = jax.random.split(key, 3)
        bound = 1.0 / (fan_in ** 0.5)
        # Stored as (in, out): transpose of PyTorch's (out, in) weight layout.
        params[f"w{i}"] = jax.random.uniform(
            kw, (fan_in, fan_out), jnp.float32, -bound, bound)
        params[f"b{i}"] = jax.random.uniform(
            kb, (1, fan_out), jnp.float32, -bound, bound)
    return params


def _reference_forward(x, params):
    """Pure-JAX reference matching the kernel's precision (bf16 operands/output, f32 acc)."""
    x2d = x.reshape(-1, K_IN).astype(jnp.bfloat16)
    h1 = jnp.dot(x2d, params["w1"].astype(jnp.bfloat16),
                 preferred_element_type=jnp.float32)
    h1 = jnp.maximum(h1 + params["b1"], 0.0).astype(jnp.bfloat16)
    h2 = jnp.dot(h1, params["w2"].astype(jnp.bfloat16),
                 preferred_element_type=jnp.float32)
    h2 = jnp.maximum(h2 + params["b2"], 0.0).astype(jnp.bfloat16)
    logits = jnp.dot(h2, params["w3"].astype(jnp.bfloat16),
                     preferred_element_type=jnp.float32) + params["b3"]
    return logits.astype(jnp.bfloat16).astype(jnp.float32)


if __name__ == "__main__":
    key = jax.random.PRNGKey(0)
    key, kx = jax.random.split(key)

    # NCHW MNIST-like input; forward flattens it to (-1, 784).
    x = jax.random.normal(kx, (2, 1, 28, 28), jnp.float32)
    params = init_params(key)
    prep = prepare_params(params)   # one-time weight conversion (outside the jitted forward)

    out = simple_mlp_forward(x, prep)
    out = jax.block_until_ready(out)
    assert out.shape == (2, 10), out.shape

    # Reference check (same bf16-operand / f32-accumulate / bf16-output precision).
    ref = _reference_forward(x, params)
    assert jnp.allclose(out, ref, atol=2e-2, rtol=2e-2), (
        jnp.max(jnp.abs(out - ref)))

    print("KERNEL_OK")
</pallas_src>

<mosaic_0001>
module attributes {stable_mosaic.version = 11 : i64} {
  func.func @_mlp_kernel(%arg0: i32, %arg1: memref<8x784xf32, #tpu.memory_space<vmem>>, %arg2: memref<784x256xbf16, #tpu.memory_space<vmem>>, %arg3: memref<1x256xf32, #tpu.memory_space<vmem>>, %arg4: memref<256x128xbf16, #tpu.memory_space<vmem>>, %arg5: memref<1x128xf32, #tpu.memory_space<vmem>>, %arg6: memref<128x128xbf16, #tpu.memory_space<vmem>>, %arg7: memref<1x128xf32, #tpu.memory_space<vmem>>, %arg8: memref<8x128xbf16, #tpu.memory_space<vmem>>) attributes {dimension_semantics = [#tpu.dimension_semantics<parallel>], iteration_bounds = array<i64: 1>, scalar_prefetch = 0 : i64, scratch_operands = 0 : i64, tpu.core_type = #tpu.core_type<tc>, window_params = [{transform_indices = @transform_0, window_bounds = array<i64: 8, 784>}, {pipeline_mode = #tpu.pipeline_mode<synchronous>, transform_indices = @transform_1, window_bounds = array<i64: 784, 256>}, {pipeline_mode = #tpu.pipeline_mode<synchronous>, transform_indices = @transform_2, window_bounds = array<i64: 1, 256>}, {pipeline_mode = #tpu.pipeline_mode<synchronous>, transform_indices = @transform_3, window_bounds = array<i64: 256, 128>}, {pipeline_mode = #tpu.pipeline_mode<synchronous>, transform_indices = @transform_4, window_bounds = array<i64: 1, 128>}, {pipeline_mode = #tpu.pipeline_mode<synchronous>, transform_indices = @transform_5, window_bounds = array<i64: 128, 128>}, {pipeline_mode = #tpu.pipeline_mode<synchronous>, transform_indices = @transform_6, window_bounds = array<i64: 1, 128>}, {transform_indices = @transform_7, window_bounds = array<i64: 8, 128>}]} {
    %c0 = arith.constant 0 : index
    %c0_0 = arith.constant 0 : index
    %0 = vector.load %arg1[%c0, %c0_0] : memref<8x784xf32, #tpu.memory_space<vmem>>, vector<8x784xf32>
    %1 = arith.truncf %0 : vector<8x784xf32> to vector<8x784xbf16>
    %c0_1 = arith.constant 0 : index
    %c0_2 = arith.constant 0 : index
    %2 = vector.load %arg2[%c0_1, %c0_2] : memref<784x256xbf16, #tpu.memory_space<vmem>>, vector<784x256xbf16>
    %cst = arith.constant dense<0.000000e+00> : vector<8x256xf32>
    %3 = tpu.matmul %1, %2, %cst {dimension_numbers = #tpu.dot_dimension_numbers<[1], [0], [0], [1], [0, 0, 1, 1], [], []>} : vector<8x784xbf16>, vector<784x256xbf16>, vector<8x256xf32> -> vector<8x256xf32>
    %c0_3 = arith.constant 0 : index
    %c0_4 = arith.constant 0 : index
    %4 = vector.load %arg3[%c0_3, %c0_4] : memref<1x256xf32, #tpu.memory_space<vmem>>, vector<1x256xf32>
    %5 = vector.broadcast %4 : vector<1x256xf32> to vector<8x256xf32>
    %6 = arith.addf %3, %5 : vector<8x256xf32>
    %cst_5 = arith.constant 0.000000e+00 : f32
    %7 = vector.broadcast %cst_5 : f32 to vector<8x256xf32>
    %8 = arith.maximumf %6, %7 : vector<8x256xf32>
    %9 = arith.truncf %8 : vector<8x256xf32> to vector<8x256xbf16>
    %c0_6 = arith.constant 0 : index
    %c0_7 = arith.constant 0 : index
    %10 = vector.load %arg4[%c0_6, %c0_7] : memref<256x128xbf16, #tpu.memory_space<vmem>>, vector<256x128xbf16>
    %cst_8 = arith.constant dense<0.000000e+00> : vector<8x128xf32>
    %11 = tpu.matmul %9, %10, %cst_8 {dimension_numbers = #tpu.dot_dimension_numbers<[1], [0], [0], [1], [0, 0, 1, 1], [], []>} : vector<8x256xbf16>, vector<256x128xbf16>, vector<8x128xf32> -> vector<8x128xf32>
    %c0_9 = arith.constant 0 : index
    %c0_10 = arith.constant 0 : index
    %12 = vector.load %arg5[%c0_9, %c0_10] : memref<1x128xf32, #tpu.memory_space<vmem>>, vector<1x128xf32>
    %13 = vector.broadcast %12 : vector<1x128xf32> to vector<8x128xf32>
    %14 = arith.addf %11, %13 : vector<8x128xf32>
    %cst_11 = arith.constant 0.000000e+00 : f32
    %15 = vector.broadcast %cst_11 : f32 to vector<8x128xf32>
    %16 = arith.maximumf %14, %15 : vector<8x128xf32>
    %17 = arith.truncf %16 : vector<8x128xf32> to vector<8x128xbf16>
    %c0_12 = arith.constant 0 : index
    %c0_13 = arith.constant 0 : index
    %18 = vector.load %arg6[%c0_12, %c0_13] : memref<128x128xbf16, #tpu.memory_space<vmem>>, vector<128x128xbf16>
    %cst_14 = arith.constant dense<0.000000e+00> : vector<8x128xf32>
    %19 = tpu.matmul %17, %18, %cst_14 {dimension_numbers = #tpu.dot_dimension_numbers<[1], [0], [0], [1], [0, 0, 1, 1], [], []>} : vector<8x128xbf16>, vector<128x128xbf16>, vector<8x128xf32> -> vector<8x128xf32>
    %c0_15 = arith.constant 0 : index
    %c0_16 = arith.constant 0 : index
    %20 = vector.load %arg7[%c0_15, %c0_16] : memref<1x128xf32, #tpu.memory_space<vmem>>, vector<1x128xf32>
    %21 = vector.broadcast %20 : vector<1x128xf32> to vector<8x128xf32>
    %22 = arith.addf %19, %21 : vector<8x128xf32>
    %23 = arith.truncf %22 : vector<8x128xf32> to vector<8x128xbf16>
    %c0_17 = arith.constant 0 : index
    %c0_18 = arith.constant 0 : index
    %24 = vector.load %arg8[%c0_17, %c0_18] : memref<8x128xbf16, #tpu.memory_space<vmem>>, vector<8x128xbf16>
    tpu.vector_store %arg8[%c0_17, %c0_18], %23 {strides = array<i32>} : memref<8x128xbf16, #tpu.memory_space<vmem>>, vector<8x128xbf16>,
    return
  }
  func.func @transform_0(%arg0: i32) -> (i32, i32) {
    %c0_i32 = arith.constant 0 : i32
    %c0_i32_0 = arith.constant 0 : i32
    return %arg0, %c0_i32 : i32, i32
  }
  func.func @transform_1(%arg0: i32) -> (i32, i32) {
    %c0_i32 = arith.constant 0 : i32
    %c0_i32_0 = arith.constant 0 : i32
    %c0_i32_1 = arith.constant 0 : i32
    return %c0_i32, %c0_i32_0 : i32, i32
  }
  func.func @transform_2(%arg0: i32) -> (i32, i32) {
    %c0_i32 = arith.constant 0 : i32
    %c0_i32_0 = arith.constant 0 : i32
    %c0_i32_1 = arith.constant 0 : i32
    return %c0_i32, %c0_i32_0 : i32, i32
  }
  func.func @transform_3(%arg0: i32) -> (i32, i32) {
    %c0_i32 = arith.constant 0 : i32
    %c0_i32_0 = arith.constant 0 : i32
    %c0_i32_1 = arith.constant 0 : i32
    return %c0_i32, %c0_i32_0 : i32, i32
  }
  func.func @transform_4(%arg0: i32) -> (i32, i32) {
    %c0_i32 = arith.constant 0 : i32
    %c0_i32_0 = arith.constant 0 : i32
    %c0_i32_1 = arith.constant 0 : i32
    return %c0_i32, %c0_i32_0 : i32, i32
  }
  func.func @transform_5(%arg0: i32) -> (i32, i32) {
    %c0_i32 = arith.constant 0 : i32
    %c0_i32_0 = arith.constant 0 : i32
    %c0_i32_1 = arith.constant 0 : i32
    return %c0_i32, %c0_i32_0 : i32, i32
  }
  func.func @transform_6(%arg0: i32) -> (i32, i32) {
    %c0_i32 = arith.constant 0 : i32
    %c0_i32_0 = arith.constant 0 : i32
    %c0_i32_1 = arith.constant 0 : i32
    return %c0_i32, %c0_i32_0 : i32, i32
  }
  func.func @transform_7(%arg0: i32) -> (i32, i32) {
    %c0_i32 = arith.constant 0 : i32
    %c0_i32_0 = arith.constant 0 : i32
    return %arg0, %c0_i32 : i32, i32
  }
}

</mosaic_0001>

<llo_original>
// kernel: simple_mlp_forward.1
$region0: #{simple_mlp_forward.1}
  #allocation0 [shape = 'u32[]', space=smem, size = 0x4, offset = 0x4, fixed_abs, tag = 'smem constant byte address 0x4 - core index']
  #allocation1 [shape = 'u32[144,128]{1,0:T(1,128)}', space=vmem, size = 0x12000, scoped, tag = 'internal scratch']
  %s0 = inlined_call_operand.vmem [shape: f32[8,784], index: 0, kind: input, shape index: {}]
  %s1 = inlined_call_operand.hbm [shape: bf16[784,256], index: 1, kind: input, shape index: {}]
  %s2 = inlined_call_operand.vmem [shape: f32[1,256], index: 2, kind: input, shape index: {}]
  %s3 = inlined_call_operand.vmem [shape: bf16[256,128], index: 3, kind: input, shape index: {}]
  %s4 = inlined_call_operand.vmem [shape: f32[1,128], index: 4, kind: input, shape index: {}]
  %s5 = inlined_call_operand.vmem [shape: bf16[128,128], index: 5, kind: input, shape index: {}]
  %s6 = inlined_call_operand.vmem [shape: f32[1,128], index: 6, kind: input, shape index: {}]
  %s7 = inlined_call_operand.vmem [shape: bf16[8,128], index: 7, kind: output, shape index: {}]
  %s8 = sld [smem:[#allocation0]]
  $region42: #{simple_mlp_forward.1} parent=0
    _
  %s10 = ssub.s32 1, %s8
  %s11 = scalar_select 0, %s10, %s8
  $region1: #{simple_mlp_forward.1} parent=0
    #allocation2 [shape = 'u8[401408]{0}', space=vmem, size = 0x62000, scoped, tag = 'input window, operand 1, single buffered']
    #allocation3 [shape = 's32[1]{0}', space=sflag, size = 0x4, scoped, tag = 'scoped memory for simple_mlp_forward.1']
    %12 = vsyncpa [#allocation3], 0
    // Predicated region
    $region2: #{simple_mlp_forward.1} parent=1 // pred_check
      _
    $region3: #{simple_mlp_forward.1} parent=1 // pred_check_branch
      %14 = sbr.rel (0) target = $region5
    $region4: #{simple_mlp_forward.1} parent=1 // pred_region
      _
    $region5: #{simple_mlp_forward.1} parent=1 // pred_fallthru
      _
    // Predicated region
    $region6: #{simple_mlp_forward.1} parent=1 // pred_check
      _
    $region7: #{simple_mlp_forward.1} parent=1 // pred_check_branch
      %16 = sbr.rel (0) target = $region9
    $region8: #{simple_mlp_forward.1} parent=1 // pred_region
      %s18 = ssub.s32 12544, 12544
      %19 = vsyncadd [#allocation3], %s18
      %s20 = sshll.u32 [#allocation2], 4
      %s21 = int_to_ptr.vmem [resolvable:$true] %s20
      %26 = dma.hbm_to_vmem [thread:$0]  %s1, 12544, %s21, [#allocation3], 128, 128, 8
    $region9: #{simple_mlp_forward.1} parent=1 // pred_fallthru
      _
    // Predicated region
    $region10: #{simple_mlp_forward.1} parent=1 // pred_check
      _
    $region11: #{simple_mlp_forward.1} parent=1 // pred_check_branch
      %28 = sbr.rel (0) target = $region13
    $region12: #{simple_mlp_forward.1} parent=1 // pred_region
      _
    $region13: #{simple_mlp_forward.1} parent=1 // pred_fallthru
      _
    // Predicated region
    $region14: #{simple_mlp_forward.1} parent=1 // pred_check
      _
    $region15: #{simple_mlp_forward.1} parent=1 // pred_check_branch
      %30 = sbr.rel (0) target = $region17
    $region16: #{simple_mlp_forward.1} parent=1 // pred_region
      _
    $region17: #{simple_mlp_forward.1} parent=1 // pred_fallthru
      _
    // Predicated region
    $region18: #{simple_mlp_forward.1} parent=1 // pred_check
      _
    $region19: #{simple_mlp_forward.1} parent=1 // pred_check_branch
      %32 = sbr.rel (0) target = $region21
    $region20: #{simple_mlp_forward.1} parent=1 // pred_region
      _
    $region21: #{simple_mlp_forward.1} parent=1 // pred_fallthru
      _
    // Predicated region
    $region22: #{simple_mlp_forward.1} parent=1 // pred_check
      _
    $region23: #{simple_mlp_forward.1} parent=1 // pred_check_branch
      %34 = sbr.rel (0) target = $region25
    $region24: #{simple_mlp_forward.1} parent=1 // pred_region
      _
    $region25: #{simple_mlp_forward.1} parent=1 // pred_fallthru
      _
    // Predicated region
    $region26: #{simple_mlp_forward.1} parent=1 // pred_check
      _
    $region27: #{simple_mlp_forward.1} parent=1 // pred_check_branch
      %36 = sbr.rel (0) target = $region29
    $region28: #{simple_mlp_forward.1} parent=1 // pred_region
      _
    $region29: #{simple_mlp_forward.1} parent=1 // pred_fallthru
      _
    // Predicated region
    $region30: #{simple_mlp_forward.1} parent=1 // pred_check
      _
    $region31: #{simple_mlp_forward.1} parent=1 // pred_check_branch
      %38 = sbr.rel (0) target = $region33
    $region32: #{simple_mlp_forward.1} parent=1 // pred_region
      %39 = dma.done [#allocation3], 12544
    $region33: #{simple_mlp_forward.1} parent=1 // pred_fallthru
      _
    %v41 = vld [vmem:[%s0] sm:$0xff]
    %v42 = vld [vmem:[%s0 + $0x8] sm:$0xff]
    %v43 = vld [vmem:[%s0 + $0x10] sm:$0xff]
    %v44 = vld [vmem:[%s0 + $0x18] sm:$0xff]
    %v45 = vld [vmem:[%s0 + $0x20] sm:$0xff]
    %v46 = vld [vmem:[%s0 + $0x28] sm:$0xff]
    %v47 = vld [vmem:[%s0 + $0x30] sm:$0xff]
    %v48 = vpack.c.bf16 %v41, %v41
    %v49 = vpack.c.bf16 %v42, %v42
    %v50 = vpack.c.bf16 %v43, %v43
    %v51 = vpack.c.bf16 %v44, %v44
    %v52 = vpack.c.bf16 %v45, %v45
    %v53 = vpack.c.bf16 %v46, %v46
    %v54 = vpack.c.bf16 %v47, %v47
    %v55 = vld [vmem:[#allocation2] sm:$0xff]
    %v56 = vld [vmem:[#allocation2 + $0x8] sm:$0xff]
    %v57 = vld [vmem:[#allocation2 + $0x10] sm:$0xff]
    %v58 = vld [vmem:[#allocation2 + $0x18] sm:$0xff]
    %v59 = vld [vmem:[#allocation2 + $0x20] sm:$0xff]
    %v60 = vld [vmem:[#allocation2 + $0x28] sm:$0xff]
    %v61 = vld [vmem:[#allocation2 + $0x30] sm:$0xff]
    %v62 = vld [vmem:[#allocation2 + $0x38] sm:$0xff]
    %v63 = vld [vmem:[#allocation2 + $0x40] sm:$0xff]
    %v64 = vld [vmem:[#allocation2 + $0x48] sm:$0xff]
    %v65 = vld [vmem:[#allocation2 + $0x50] sm:$0xff]
    %v66 = vld [vmem:[#allocation2 + $0x58] sm:$0xff]
    %v67 = vld [vmem:[#allocation2 + $0x60] sm:$0xff]
    %v68 = vld [vmem:[#allocation2 + $0x68] sm:$0xff]
    %v69 = vld [vmem:[#allocation2 + $0x70] sm:$0xff]
    %v70 = vld [vmem:[#allocation2 + $0x78] sm:$0xff]
    %v71 = vld [vmem:[#allocation2 + $0x80] sm:$0xff]
    %v72 = vld [vmem:[#allocation2 + $0x88] sm:$0xff]
    %v73 = vld [vmem:[#allocation2 + $0x90] sm:$0xff]
    %v74 = vld [vmem:[#allocation2 + $0x98] sm:$0xff]
    %v75 = vld [vmem:[#allocation2 + $0xa0] sm:$0xff]
    %v76 = vld [vmem:[#allocation2 + $0xa8] sm:$0xff]
    %v77 = vld [vmem:[#allocation2 + $0xb0] sm:$0xff]
    %v78 = vld [vmem:[#allocation2 + $0xb8] sm:$0xff]
    %v79 = vld [vmem:[#allocation2 + $0xc0] sm:$0xff]
    %v80 = vld [vmem:[#allocation2 + $0xc8] sm:$0xff]
    %v81 = vld [vmem:[#allocation2 + $0xd0] sm:$0xff]
    %v82 = vld [vmem:[#allocation2 + $0xd8] sm:$0xff]
    %v83 = vld [vmem:[#allocation2 + $0xe0] sm:$0xff]
    %v84 = vld [vmem:[#allocation2 + $0xe8] sm:$0xff]
    %v85 = vld [vmem:[#allocation2 + $0xf0] sm:$0xff]
    %v86 = vld [vmem:[#allocation2 + $0xf8] sm:$0xff]
    %v87 = vld [vmem:[#allocation2 + $0x100] sm:$0xff]
    %v88 = vld [vmem:[#allocation2 + $0x108] sm:$0xff]
    %v89 = vld [vmem:[#allocation2 + $0x110] sm:$0xff]
    %v90 = vld [vmem:[#allocation2 + $0x118] sm:$0xff]
    %v91 = vld [vmem:[#allocation2 + $0x120] sm:$0xff]
    %v92 = vld [vmem:[#allocation2 + $0x128] sm:$0xff]
    %v93 = vld [vmem:[#allocation2 + $0x130] sm:$0xff]
    %v94 = vld [vmem:[#allocation2 + $0x138] sm:$0xff]
    %v95 = vld [vmem:[#allocation2 + $0x140] sm:$0xff]
    %v96 = vld [vmem:[#allocation2 + $0x148] sm:$0xff]
    %v97 = vld [vmem:[#allocation2 + $0x150] sm:$0xff]
    %v98 = vld [vmem:[#allocation2 + $0x158] sm:$0xff]
    %v99 = vld [vmem:[#allocation2 + $0x160] sm:$0xff]
    %v100 = vld [vmem:[#allocation2 + $0x168] sm:$0xff]
    %v101 = vld [vmem:[#allocation2 + $0x170] sm:$0xff]
    %v102 = vld [vmem:[#allocation2 + $0x178] sm:$0xff]
    %v103 = vld [vmem:[#allocation2 + $0x180] sm:$0xff]
    %v104 = vld [vmem:[#allocation2 + $0x188] sm:$0xff]
    %v105 = vld [vmem:[#allocation2 + $0x190] sm:$0xff]
    %v106 = vld [vmem:[#allocation2 + $0x198] sm:$0xff]
    %v107 = vld [vmem:[#allocation2 + $0x1a0] sm:$0xff]
    %v108 = vld [vmem:[#allocation2 + $0x1a8] sm:$0xff]
    %v109 = vld [vmem:[#allocation2 + $0x1b0] sm:$0xff]
    %v110 = vld [vmem:[#allocation2 + $0x1b8] sm:$0xff]
    %v111 = vld [vmem:[#allocation2 + $0x1c0] sm:$0xff]
    %v112 = vld [vmem:[#allocation2 + $0x1c8] sm:$0xff]
    %v113 = vld [vmem:[#allocation2 + $0x1d0] sm:$0xff]
    %v114 = vld [vmem:[#allocation2 + $0x1d8] sm:$0xff]
    %v115 = vld [vmem:[#allocation2 + $0x1e0] sm:$0xff]
    %v116 = vld [vmem:[#allocation2 + $0x1e8] sm:$0xff]
    %v117 = vld [vmem:[#allocation2 + $0x1f0] sm:$0xff]
    %v118 = vld [vmem:[#allocation2 + $0x1f8] sm:$0xff]
    %v119 = vld [vmem:[#allocation2 + $0x200] sm:$0xff]
    %v120 = vld [vmem:[#allocation2 + $0x208] sm:$0xff]
    %v121 = vld [vmem:[#allocation2 + $0x210] sm:$0xff]
    %v122 = vld [vmem:[#allocation2 + $0x218] sm:$0xff]
    %v123 = vld [vmem:[#allocation2 + $0x220] sm:$0xff]
    %v124 = vld [vmem:[#allocation2 + $0x228] sm:$0xff]
    %v125 = vld [vmem:[#allocation2 + $0x230] sm:$0xff]
    %v126 = vld [vmem:[#allocation2 + $0x238] sm:$0xff]
    %v127 = vld [vmem:[#allocation2 + $0x240] sm:$0xff]
    %v128 = vld [vmem:[#allocation2 + $0x248] sm:$0xff]
    %v129 = vld [vmem:[#allocation2 + $0x250] sm:$0xff]
    %v130 = vld [vmem:[#allocation2 + $0x258] sm:$0xff]
    %v131 = vld [vmem:[#allocation2 + $0x260] sm:$0xff]
    %v132 = vld [vmem:[#allocation2 + $0x268] sm:$0xff]
    %v133 = vld [vmem:[#allocation2 + $0x270] sm:$0xff]
    %v134 = vld [vmem:[#allocation2 + $0x278] sm:$0xff]
    %v135 = vld [vmem:[#allocation2 + $0x280] sm:$0xff]
    %v136 = vld [vmem:[#allocation2 + $0x288] sm:$0xff]
    %v137 = vld [vmem:[#allocation2 + $0x290] sm:$0xff]
    %v138 = vld [vmem:[#allocation2 + $0x298] sm:$0xff]
    %v139 = vld [vmem:[#allocation2 + $0x2a0] sm:$0xff]
    %v140 = vld [vmem:[#allocation2 + $0x2a8] sm:$0xff]
    %v141 = vld [vmem:[#allocation2 + $0x2b0] sm:$0xff]
    %v142 = vld [vmem:[#allocation2 + $0x2b8] sm:$0xff]
    %v143 = vld [vmem:[#allocation2 + $0x2c0] sm:$0xff]
    %v144 = vld [vmem:[#allocation2 + $0x2c8] sm:$0xff]
    %v145 = vld [vmem:[#allocation2 + $0x2d0] sm:$0xff]
    %v146 = vld [vmem:[#allocation2 + $0x2d8] sm:$0xff]
    %v147 = vld [vmem:[#allocation2 + $0x2e0] sm:$0xff]
    %v148 = vld [vmem:[#allocation2 + $0x2e8] sm:$0xff]
    %v149 = vld [vmem:[#allocation2 + $0x2f0] sm:$0xff]
    %v150 = vld [vmem:[#allocation2 + $0x2f8] sm:$0xff]
    %v151 = vld [vmem:[#allocation2 + $0x300] sm:$0xff]
    %v152 = vld [vmem:[#allocation2 + $0x308] sm:$0xff]
    %v153 = vld [vmem:[%s2] sm:$0x3]
    %v155 = vlaneseq
    %v156 = vshrl.u32 %v155, 7
    %v157 = vsub.s32 0, %v156
    %v158 = vrot.slane %v153, %v157
    %v159 = vlaneseq
    %v160 = vshrl.u32 %v159, 7
    %v161 = vsub.s32 1, %v160
    %v162 = vrot.slane %v153, %v161
    %v263 = vunpack.c.l.b16 %v55
    %v264 = vunpack.c.h.b16 %v55
    %v265 = vunpack.c.l.b16 %v56
    %v266 = vunpack.c.h.b16 %v56
    %v267 = vunpack.c.l.b16 %v57
    %v268 = vunpack.c.h.b16 %v57
    %v269 = vunpack.c.l.b16 %v58
    %v270 = vunpack.c.h.b16 %v58
    %v271 = vunpack.c.l.b16 %v59
    %v272 = vunpack.c.h.b16 %v59
    %v273 = vunpack.c.l.b16 %v60
    %v274 = vunpack.c.h.b16 %v60
    %v275 = vunpack.c.l.b16 %v61
    %v276 = vunpack.c.h.b16 %v61
    %v277 = vunpack.c.l.b16 %v62
    %v278 = vunpack.c.h.b16 %v62
    %v279 = vunpack.c.l.b16 %v63
    %v280 = vunpack.c.h.b16 %v63
    %v281 = vunpack.c.l.b16 %v64
    %v282 = vunpack.c.h.b16 %v64
    %v283 = vunpack.c.l.b16 %v65
    %v284 = vunpack.c.h.b16 %v65
    %v285 = vunpack.c.l.b16 %v66
    %v286 = vunpack.c.h.b16 %v66
    %v287 = vunpack.c.l.b16 %v67
    %v288 = vunpack.c.h.b16 %v67
    %v289 = vunpack.c.l.b16 %v68
    %v290 = vunpack.c.h.b16 %v68
    %v291 = vunpack.c.l.b16 %v69
    %v292 = vunpack.c.h.b16 %v69
    %v293 = vunpack.c.l.b16 %v70
    %v294 = vunpack.c.h.b16 %v70
    %v295 = vunpack.c.l.b16 %v71
    %v296 = vunpack.c.h.b16 %v71
    %v297 = vunpack.c.l.b16 %v72
    %v298 = vunpack.c.h.b16 %v72
    %v299 = vunpack.c.l.b16 %v73
    %v300 = vunpack.c.h.b16 %v73
    %v301 = vunpack.c.l.b16 %v74
    %v302 = vunpack.c.h.b16 %v74
    %v303 = vunpack.c.l.b16 %v75
    %v304 = vunpack.c.h.b16 %v75
    %v305 = vunpack.c.l.b16 %v76
    %v306 = vunpack.c.h.b16 %v76
    %v307 = vunpack.c.l.b16 %v77
    %v308 = vunpack.c.h.b16 %v77
    %v309 = vunpack.c.l.b16 %v78
    %v310 = vunpack.c.h.b16 %v78
    %v311 = vunpack.c.l.b16 %v79
    %v312 = vunpack.c.h.b16 %v79
    %v313 = vunpack.c.l.b16 %v80
    %v314 = vunpack.c.h.b16 %v80
    %v315 = vunpack.c.l.b16 %v81
    %v316 = vunpack.c.h.b16 %v81
    %v317 = vunpack.c.l.b16 %v82
    %v318 = vunpack.c.h.b16 %v82
    %v319 = vunpack.c.l.b16 %v83
    %v320 = vunpack.c.h.b16 %v83
    %v321 = vunpack.c.l.b16 %v84
    %v322 = vunpack.c.h.b16 %v84
    %v323 = vunpack.c.l.b16 %v85
    %v324 = vunpack.c.h.b16 %v85
    %v325 = vunpack.c.l.b16 %v86
    %v326 = vunpack.c.h.b16 %v86
    %v327 = vunpack.c.l.b16 %v87
    %v328 = vunpack.c.h.b16 %v87
    %v329 = vunpack.c.l.b16 %v88
    %v330 = vunpack.c.h.b16 %v88
    %v331 = vunpack.c.l.b16 %v89
    %v332 = vunpack.c.h.b16 %v89
    %v333 = vunpack.c.l.b16 %v90
    %v334 = vunpack.c.h.b16 %v90
    %v335 = vunpack.c.l.b16 %v91
    %v336 = vunpack.c.h.b16 %v91
    %v337 = vunpack.c.l.b16 %v92
    %v338 = vunpack.c.h.b16 %v92
    %v339 = vunpack.c.l.b16 %v93
    %v340 = vunpack.c.h.b16 %v93
    %v341 = vunpack.c.l.b16 %v94
    %v342 = vunpack.c.h.b16 %v94
    %v343 = vunpack.c.l.b16 %v95
    %v344 = vunpack.c.h.b16 %v95
    %v345 = vunpack.c.l.b16 %v96
    %v346 = vunpack.c.h.b16 %v96
    %v347 = vunpack.c.l.b16 %v97
    %v348 = vunpack.c.h.b16 %v97
    %v349 = vunpack.c.l.b16 %v98
    %v350 = vunpack.c.h.b16 %v98
    %v351 = vunpack.c.l.b16 %v99
    %v352 = vunpack.c.h.b16 %v99
    %v353 = vunpack.c.l.b16 %v100
    %v354 = vunpack.c.h.b16 %v100
    %v355 = vunpack.c.l.b16 %v101
    %v356 = vunpack.c.h.b16 %v101
    %v357 = vunpack.c.l.b16 %v102
    %v358 = vunpack.c.h.b16 %v102
    %v359 = vunpack.c.l.b16 %v103
    %v360 = vunpack.c.h.b16 %v103
    %v361 = vunpack.c.l.b16 %v104
    %v362 = vunpack.c.h.b16 %v104
    %v363 = vunpack.c.l.b16 %v105
    %v364 = vunpack.c.h.b16 %v105
    %v365 = vunpack.c.l.b16 %v106
    %v366 = vunpack.c.h.b16 %v106
    %v367 = vunpack.c.l.b16 %v107
    %v368 = vunpack.c.h.b16 %v107
    %v369 = vunpack.c.l.b16 %v108
    %v370 = vunpack.c.h.b16 %v108
    %v371 = vunpack.c.l.b16 %v109
    %v372 = vunpack.c.h.b16 %v109
    %v373 = vunpack.c.l.b16 %v110
    %v374 = vunpack.c.h.b16 %v110
    %v375 = vunpack.c.l.b16 %v111
    %v376 = vunpack.c.h.b16 %v111
    %v377 = vunpack.c.l.b16 %v112
    %v378 = vunpack.c.h.b16 %v112
    %v379 = vunpack.c.l.b16 %v113
    %v380 = vunpack.c.h.b16 %v113
    %v381 = vunpack.c.l.b16 %v114
    %v382 = vunpack.c.h.b16 %v114
    %v383 = vunpack.c.l.b16 %v115
    %v384 = vunpack.c.h.b16 %v115
    %v385 = vunpack.c.l.b16 %v116
    %v386 = vunpack.c.h.b16 %v116
    %v387 = vunpack.c.l.b16 %v117
    %v388 = vunpack.c.h.b16 %v117
    %v389 = vunpack.c.l.b16 %v118
    %v390 = vunpack.c.h.b16 %v118
    %v391 = vunpack.c.l.b16 %v119
    %v392 = vunpack.c.h.b16 %v119
    %v393 = vunpack.c.l.b16 %v120
    %v394 = vunpack.c.h.b16 %v120
    %v395 = vunpack.c.l.b16 %v121
    %v396 = vunpack.c.h.b16 %v121
    %v397 = vunpack.c.l.b16 %v122
    %v398 = vunpack.c.h.b16 %v122
    %v399 = vunpack.c.l.b16 %v123
    %v400 = vunpack.c.h.b16 %v123
    %v401 = vunpack.c.l.b16 %v124
    %v402 = vunpack.c.h.b16 %v124
    %v403 = vunpack.c.l.b16 %v125
    %v404 = vunpack.c.h.b16 %v125
    %v405 = vunpack.c.l.b16 %v126
    %v406 = vunpack.c.h.b16 %v126
    %v407 = vunpack.c.l.b16 %v127
    %v408 = vunpack.c.h.b16 %v127
    %v409 = vunpack.c.l.b16 %v128
    %v410 = vunpack.c.h.b16 %v128
    %v411 = vunpack.c.l.b16 %v129
    %v412 = vunpack.c.h.b16 %v129
    %v413 = vunpack.c.l.b16 %v130
    %v414 = vunpack.c.h.b16 %v130
    %v415 = vunpack.c.l.b16 %v131
    %v416 = vunpack.c.h.b16 %v131
    %v417 = vunpack.c.l.b16 %v132
    %v418 = vunpack.c.h.b16 %v132
    %v419 = vunpack.c.l.b16 %v133
    %v420 = vunpack.c.h.b16 %v133
    %v421 = vunpack.c.l.b16 %v134
    %v422 = vunpack.c.h.b16 %v134
    %v423 = vunpack.c.l.b16 %v135
    %v424 = vunpack.c.h.b16 %v135
    %v425 = vunpack.c.l.b16 %v136
    %v426 = vunpack.c.h.b16 %v136
    %v427 = vunpack.c.l.b16 %v137
    %v428 = vunpack.c.h.b16 %v137
    %v429 = vunpack.c.l.b16 %v138
    %v430 = vunpack.c.h.b16 %v138
    %v431 = vunpack.c.l.b16 %v139
    %v432 = vunpack.c.h.b16 %v139
    %v433 = vunpack.c.l.b16 %v140
    %v434 = vunpack.c.h.b16 %v140
    %v435 = vunpack.c.l.b16 %v141
    %v436 = vunpack.c.h.b16 %v141
    %v437 = vunpack.c.l.b16 %v142
    %v438 = vunpack.c.h.b16 %v142
    %v439 = vunpack.c.l.b16 %v143
    %v440 = vunpack.c.h.b16 %v143
    %v441 = vunpack.c.l.b16 %v144
    %v442 = vunpack.c.h.b16 %v144
    %v443 = vunpack.c.l.b16 %v145
    %v444 = vunpack.c.h.b16 %v145
    %v445 = vunpack.c.l.b16 %v146
    %v446 = vunpack.c.h.b16 %v146
    %v447 = vunpack.c.l.b16 %v147
    %v448 = vunpack.c.h.b16 %v147
    %v449 = vunpack.c.l.b16 %v148
    %v450 = vunpack.c.h.b16 %v148
    %v451 = vunpack.c.l.b16 %v149
    %v452 = vunpack.c.h.b16 %v149
    %v453 = vunpack.c.l.b16 %v150
    %v454 = vunpack.c.h.b16 %v150
    %v455 = vunpack.c.l.b16 %v151
    %v456 = vunpack.c.h.b16 %v151
    %v457 = vunpack.c.l.b16 %v152
    %v458 = vunpack.c.h.b16 %v152
    %v459 = vpack.c.b16 %v265, %v263
    %v460 = vpack.c.b16 %v266, %v264
    %v461 = vpack.c.b16 %v269, %v267
    %v462 = vpack.c.b16 %v270, %v268
    %v463 = vpack.c.b16 %v273, %v271
    %v464 = vpack.c.b16 %v274, %v272
    %v465 = vpack.c.b16 %v277, %v275
    %v466 = vpack.c.b16 %v278, %v276
    %v467 = vpack.c.b16 %v281, %v279
    %v468 = vpack.c.b16 %v282, %v280
    %v469 = vpack.c.b16 %v285, %v283
    %v470 = vpack.c.b16 %v286, %v284
    %v471 = vpack.c.b16 %v289, %v287
    %v472 = vpack.c.b16 %v290, %v288
    %v473 = vpack.c.b16 %v293, %v291
    %v474 = vpack.c.b16 %v294, %v292
    %v475 = vpack.c.b16 %v297, %v295
    %v476 = vpack.c.b16 %v298, %v296
    %v477 = vpack.c.b16 %v301, %v299
    %v478 = vpack.c.b16 %v302, %v300
    %v479 = vpack.c.b16 %v305, %v303
    %v480 = vpack.c.b16 %v306, %v304
    %v481 = vpack.c.b16 %v309, %v307
    %v482 = vpack.c.b16 %v310, %v308
    %v483 = vpack.c.b16 %v313, %v311
    %v484 = vpack.c.b16 %v314, %v312
    %v485 = vpack.c.b16 %v317, %v315
    %v486 = vpack.c.b16 %v318, %v316
    %v487 = vpack.c.b16 %v321, %v319
    %v488 = vpack.c.b16 %v322, %v320
    %v489 = vpack.c.b16 %v325, %v323
    %v490 = vpack.c.b16 %v326, %v324
    %v491 = vpack.c.b16 %v329, %v327
    %v492 = vpack.c.b16 %v330, %v328
    %v493 = vpack.c.b16 %v333, %v331
    %v494 = vpack.c.b16 %v334, %v332
    %v495 = vpack.c.b16 %v337, %v335
    %v496 = vpack.c.b16 %v338, %v336
    %v497 = vpack.c.b16 %v341, %v339
    %v498 = vpack.c.b16 %v342, %v340
    %v499 = vpack.c.b16 %v345, %v343
    %v500 = vpack.c.b16 %v346, %v344
    %v501 = vpack.c.b16 %v349, %v347
    %v502 = vpack.c.b16 %v350, %v348
    %v503 = vpack.c.b16 %v353, %v351
    %v504 = vpack.c.b16 %v354, %v352
    %v505 = vpack.c.b16 %v357, %v355
    %v506 = vpack.c.b16 %v358, %v356
    %v507 = vpack.c.b16 %v361, %v359
    %v508 = vpack.c.b16 %v362, %v360
    %v509 = vpack.c.b16 %v365, %v363
    %v510 = vpack.c.b16 %v366, %v364
    %v511 = vpack.c.b16 %v369, %v367
    %v512 = vpack.c.b16 %v370, %v368
    %v513 = vpack.c.b16 %v373, %v371
    %v514 = vpack.c.b16 %v374, %v372
    %v515 = vpack.c.b16 %v377, %v375
    %v516 = vpack.c.b16 %v378, %v376
    %v517 = vpack.c.b16 %v381, %v379
    %v518 = vpack.c.b16 %v382, %v380
    %v519 = vpack.c.b16 %v385, %v383
    %v520 = vpack.c.b16 %v386, %v384
    %v521 = vpack.c.b16 %v389, %v387
    %v522 = vpack.c.b16 %v390, %v388
    %v523 = vpack.c.b16 %v393, %v391
    %v524 = vpack.c.b16 %v394, %v392
    %v525 = vpack.c.b16 %v397, %v395
    %v526 = vpack.c.b16 %v398, %v396
    %v527 = vpack.c.b16 %v401, %v399
    %v528 = vpack.c.b16 %v402, %v400
    %v529 = vpack.c.b16 %v405, %v403
    %v530 = vpack.c.b16 %v406, %v404
    %v531 = vpack.c.b16 %v409, %v407
    %v532 = vpack.c.b16 %v410, %v408
    %v533 = vpack.c.b16 %v413, %v411
    %v534 = vpack.c.b16 %v414, %v412
    %v535 = vpack.c.b16 %v417, %v415
    %v536 = vpack.c.b16 %v418, %v416
    %v537 = vpack.c.b16 %v421, %v419
    %v538 = vpack.c.b16 %v422, %v420
    %v539 = vpack.c.b16 %v425, %v423
    %v540 = vpack.c.b16 %v426, %v424
    %v541 = vpack.c.b16 %v429, %v427
    %v542 = vpack.c.b16 %v430, %v428
    %v543 = vpack.c.b16 %v433, %v431
    %v544 = vpack.c.b16 %v434, %v432
    %v545 = vpack.c.b16 %v437, %v435
    %v546 = vpack.c.b16 %v438, %v436
    %v547 = vpack.c.b16 %v441, %v439
    %v548 = vpack.c.b16 %v442, %v440
    %v549 = vpack.c.b16 %v445, %v443
    %v550 = vpack.c.b16 %v446, %v444
    %v551 = vpack.c.b16 %v449, %v447
    %v552 = vpack.c.b16 %v450, %v448
    %v553 = vpack.c.b16 %v453, %v451
    %v554 = vpack.c.b16 %v454, %v452
    %v555 = vpack.c.b16 %v457, %v455
    %v556 = vpack.c.b16 %v458, %v456
    %vm655 = vcmask 130048
    %v657 = vsel %vm655, %v54, 0
    %659 = vmatprep.subr.bf16.mxu0 %v474
    %660 = vmatpush1.bf16.msra.mxu0 %v473
    %661 = vmatprep.subr.bf16.mxu0 %v472
    %662 = vmatpush1.bf16.msra.mxu0 %v471
    %663 = vmatprep.subr.bf16.mxu0 %v470
    %664 = vmatpush1.bf16.msra.mxu0 %v469
    %665 = vmatprep.subr.bf16.mxu0 %v468
    %666 = vmatpush1.bf16.msra.mxu0 %v467
    %667 = vmatprep.subr.bf16.mxu0 %v466
    %668 = vmatpush1.bf16.msra.mxu0 %v465
    %669 = vmatprep.subr.bf16.mxu0 %v464
    %670 = vmatpush1.bf16.msra.mxu0 %v463
    %671 = vmatprep.subr.bf16.mxu0 %v462
    %672 = vmatpush1.bf16.msra.mxu0 %v461
    %673 = vmatprep.subr.bf16.mxu0 %v460
    %674 = vmatpush1.bf16.msra.mxu0 %v459
    %675 = vmatprep.subr.bf16.mxu0 %v490
    %676 = vmatpush2.bf16.msra.mxu0 %v489
    %677 = vmatprep.subr.bf16.mxu0 %v488
    %678 = vmatpush2.bf16.msra.mxu0 %v487
    %679 = vmatprep.subr.bf16.mxu0 %v486
    %680 = vmatpush2.bf16.msra.mxu0 %v485
    %681 = vmatprep.subr.bf16.mxu0 %v484
    %682 = vmatpush2.bf16.msra.mxu0 %v483
    %683 = vmatprep.subr.bf16.mxu0 %v482
    %684 = vmatpush2.bf16.msra.mxu0 %v481
    %685 = vmatprep.subr.bf16.mxu0 %v480
    %686 = vmatpush2.bf16.msra.mxu0 %v479
    %687 = vmatprep.subr.bf16.mxu0 %v478
    %688 = vmatpush2.bf16.msra.mxu0 %v477
    %689 = vmatprep.subr.bf16.mxu0 %v476
    %690 = vmatpush2.bf16.msra.mxu0 %v475
    %691 = vmatprep.mubr.bf16.mxu0 %v49
    %692 = vmatmul.mubr.bf16.gmra.mxu0 %v48
    %v693 = vpop.f32.mrf.mxu0
    %v694 = vadd.f32 %v158, %v693
    %v695 = vpop.f32.mrf.mxu0
    %v696 = vadd.f32 %v162, %v695
    %v697 = vpop.f32.mrf.mxu0
    %v698 = vpop.f32.mrf.mxu0
    %699 = vdwg.mxu0
    %700 = vmatprep.subr.bf16.mxu0 %v506
    %701 = vmatpush1.bf16.msra.mxu0 %v505
    %702 = vmatprep.subr.bf16.mxu0 %v504
    %703 = vmatpush1.bf16.msra.mxu0 %v503
    %704 = vmatprep.subr.bf16.mxu0 %v502
    %705 = vmatpush1.bf16.msra.mxu0 %v501
    %706 = vmatprep.subr.bf16.mxu0 %v500
    %707 = vmatpush1.bf16.msra.mxu0 %v499
    %708 = vmatprep.subr.bf16.mxu0 %v498
    %709 = vmatpush1.bf16.msra.mxu0 %v497
    %710 = vmatprep.subr.bf16.mxu0 %v496
    %711 = vmatpush1.bf16.msra.mxu0 %v495
    %712 = vmatprep.subr.bf16.mxu0 %v494
    %713 = vmatpush1.bf16.msra.mxu0 %v493
    %714 = vmatprep.subr.bf16.mxu0 %v492
    %715 = vmatpush1.bf16.msra.mxu0 %v491
    %716 = vmatprep.subr.bf16.mxu0 %v522
    %717 = vmatpush2.bf16.msra.mxu0 %v521
    %718 = vmatprep.subr.bf16.mxu0 %v520
    %719 = vmatpush2.bf16.msra.mxu0 %v519
    %720 = vmatprep.subr.bf16.mxu0 %v518
    %721 = vmatpush2.bf16.msra.mxu0 %v517
    %722 = vmatprep.subr.bf16.mxu0 %v516
    %723 = vmatpush2.bf16.msra.mxu0 %v515
    %724 = vmatprep.subr.bf16.mxu0 %v514
    %725 = vmatpush2.bf16.msra.mxu0 %v513
    %726 = vmatprep.subr.bf16.mxu0 %v512
    %727 = vmatpush2.bf16.msra.mxu0 %v511
    %728 = vmatprep.subr.bf16.mxu0 %v510
    %729 = vmatpush2.bf16.msra.mxu0 %v509
    %730 = vmatprep.subr.bf16.mxu0 %v508
    %731 = vmatpush2.bf16.msra.mxu0 %v507
    %732 = vmatprep.mubr.bf16.mxu0 %v51
    %733 = vmatmul.mubr.bf16.gmra.mxu0 %v50
    %v734 = vpop.f32.mrf.mxu0
    %v735 = vadd.f32 %v694, %v734
    %v736 = vpop.f32.mrf.mxu0
    %v737 = vadd.f32 %v696, %v736
    %v738 = vpop.f32.mrf.mxu0
    %v739 = vpop.f32.mrf.mxu0
    %740 = vdwg.mxu0
    %741 = vmatprep.subr.bf16.mxu0 %v538
    %742 = vmatpush1.bf16.msra.mxu0 %v537
    %743 = vmatprep.subr.bf16.mxu0 %v536
    %744 = vmatpush1.bf16.msra.mxu0 %v535
    %745 = vmatprep.subr.bf16.mxu0 %v534
    %746 = vmatpush1.bf16.msra.mxu0 %v533
    %747 = vmatprep.subr.bf16.mxu0 %v532
    %748 = vmatpush1.bf16.msra.mxu0 %v531
    %749 = vmatprep.subr.bf16.mxu0 %v530
    %750 = vmatpush1.bf16.msra.mxu0 %v529
    %751 = vmatprep.subr.bf16.mxu0 %v528
    %752 = vmatpush1.bf16.msra.mxu0 %v527
    %753 = vmatprep.subr.bf16.mxu0 %v526
    %754 = vmatpush1.bf16.msra.mxu0 %v525
    %755 = vmatprep.subr.bf16.mxu0 %v524
    %756 = vmatpush1.bf16.msra.mxu0 %v523
    %757 = vmatprep.subr.bf16.mxu0 %v554
    %758 = vmatpush2.bf16.msra.mxu0 %v553
    %759 = vmatprep.subr.bf16.mxu0 %v552
    %760 = vmatpush2.bf16.msra.mxu0 %v551
    %761 = vmatprep.subr.bf16.mxu0 %v550
    %762 = vmatpush2.bf16.msra.mxu0 %v549
    %763 = vmatprep.subr.bf16.mxu0 %v548
    %764 = vmatpush2.bf16.msra.mxu0 %v547
    %765 = vmatprep.subr.bf16.mxu0 %v546
    %766 = vmatpush2.bf16.msra.mxu0 %v545
    %767 = vmatprep.subr.bf16.mxu0 %v544
    %768 = vmatpush2.bf16.msra.mxu0 %v543
    %769 = vmatprep.subr.bf16.mxu0 %v542
    %770 = vmatpush2.bf16.msra.mxu0 %v541
    %771 = vmatprep.subr.bf16.mxu0 %v540
    %772 = vmatpush2.bf16.msra.mxu0 %v539
    %773 = vmatprep.mubr.bf16.mxu0 %v53
    %774 = vmatmul.mubr.bf16.gmra.mxu0 %v52
    %v775 = vpop.f32.mrf.mxu0
    %v776 = vadd.f32 %v735, %v775
    %v777 = vpop.f32.mrf.mxu0
    %v778 = vadd.f32 %v737, %v777
    %v779 = vpop.f32.mrf.mxu0
    %v780 = vpop.f32.mrf.mxu0
    %781 = vdwg.mxu0
    %782 = vmatprep.subr.bf16.mxu0 0
    %783 = vmatpush1.bf16.msra.mxu0 0
    %784 = vmatprep.subr.bf16.mxu0 0
    %785 = vmatpush1.bf16.msra.mxu0 0
    %786 = vmatprep.subr.bf16.mxu0 0
    %787 = vmatpush1.bf16.msra.mxu0 0
    %788 = vmatprep.subr.bf16.mxu0 0
    %789 = vmatpush1.bf16.msra.mxu0 0
    %790 = vmatprep.subr.bf16.mxu0 0
    %791 = vmatpush1.bf16.msra.mxu0 0
    %792 = vmatprep.subr.bf16.mxu0 0
    %793 = vmatpush1.bf16.msra.mxu0 0
    %794 = vmatprep.subr.bf16.mxu0 0
    %795 = vmatpush1.bf16.msra.mxu0 0
    %796 = vmatprep.subr.bf16.mxu0 %v556
    %797 = vmatpush1.bf16.msra.mxu0 %v555
    %798 = vmatprep.subr.bf16.mxu0 0
    %799 = vmatpush2.bf16.msra.mxu0 0
    %800 = vmatprep.subr.bf16.mxu0 0
    %801 = vmatpush2.bf16.msra.mxu0 0
    %802 = vmatprep.subr.bf16.mxu0 0
    %803 = vmatpush2.bf16.msra.mxu0 0
    %804 = vmatprep.subr.bf16.mxu0 0
    %805 = vmatpush2.bf16.msra.mxu0 0
    %806 = vmatprep.subr.bf16.mxu0 0
    %807 = vmatpush2.bf16.msra.mxu0 0
    %808 = vmatprep.subr.bf16.mxu0 0
    %809 = vmatpush2.bf16.msra.mxu0 0
    %810 = vmatprep.subr.bf16.mxu0 0
    %811 = vmatpush2.bf16.msra.mxu0 0
    %812 = vmatprep.subr.bf16.mxu0 0
    %813 = vmatpush2.bf16.msra.mxu0 0
    %814 = vmatprep.mubr.bf16.mxu0 0
    %815 = vmatmul.mubr.bf16.gmra.mxu0 %v657
    %v816 = vpop.f32.mrf.mxu0
    %v817 = vadd.f32 %v776, %v816
    %v818 = vpop.f32.mrf.mxu0
    %v819 = vadd.f32 %v778, %v818
    %v820 = vpop.f32.mrf.mxu0
    %v821 = vpop.f32.mrf.mxu0
    %822 = vdwg.mxu0
    %v823 = vmax.f32 %v817, 0.0
    %v824 = vmax.f32 %v819, 0.0
    %v825 = vpack.c.bf16 %v823, %v823
    %v826 = vpack.c.bf16 %v824, %v824
    %v827 = vld [vmem:[%s3] sm:$0xf]
    %v828 = vld [vmem:[%s3 + $0x4] sm:$0xf]
    %v829 = vld [vmem:[%s3 + $0x8] sm:$0xf]
    %v830 = vld [vmem:[%s3 + $0xc] sm:$0xf]
    %v831 = vld [vmem:[%s3 + $0x10] sm:$0xf]
    %v832 = vld [vmem:[%s3 + $0x14] sm:$0xf]
    %v833 = vld [vmem:[%s3 + $0x18] sm:$0xf]
    %v834 = vld [vmem:[%s3 + $0x1c] sm:$0xf]
    %v835 = vld [vmem:[%s3 + $0x20] sm:$0xf]
    %v836 = vld [vmem:[%s3 + $0x24] sm:$0xf]
    %v837 = vld [vmem:[%s3 + $0x28] sm:$0xf]
    %v838 = vld [vmem:[%s3 + $0x2c] sm:$0xf]
    %v839 = vld [vmem:[%s3 + $0x30] sm:$0xf]
    %v840 = vld [vmem:[%s3 + $0x34] sm:$0xf]
    %v841 = vld [vmem:[%s3 + $0x38] sm:$0xf]
    %v842 = vld [vmem:[%s3 + $0x3c] sm:$0xf]
    %v843 = vld [vmem:[%s3 + $0x40] sm:$0xf]
    %v844 = vld [vmem:[%s3 + $0x44] sm:$0xf]
    %v845 = vld [vmem:[%s3 + $0x48] sm:$0xf]
    %v846 = vld [vmem:[%s3 + $0x4c] sm:$0xf]
    %v847 = vld [vmem:[%s3 + $0x50] sm:$0xf]
    %v848 = vld [vmem:[%s3 + $0x54] sm:$0xf]
    %v849 = vld [vmem:[%s3 + $0x58] sm:$0xf]
    %v850 = vld [vmem:[%s3 + $0x5c] sm:$0xf]
    %v851 = vld [vmem:[%s3 + $0x60] sm:$0xf]
    %v852 = vld [vmem:[%s3 + $0x64] sm:$0xf]
    %v853 = vld [vmem:[%s3 + $0x68] sm:$0xf]
    %v854 = vld [vmem:[%s3 + $0x6c] sm:$0xf]
    %v855 = vld [vmem:[%s3 + $0x70] sm:$0xf]
    %v856 = vld [vmem:[%s3 + $0x74] sm:$0xf]
    %v857 = vld [vmem:[%s3 + $0x78] sm:$0xf]
    %v858 = vld [vmem:[%s3 + $0x7c] sm:$0xf]
    %v859 = vld [vmem:[%s4] sm:$0x1]
    %v861 = vlaneseq
    %v862 = vshrl.u32 %v861, 7
    %v863 = vsub.s32 0, %v862
    %v864 = vrot.slane %v859, %v863
    %v898 = vunpack.c.l.b16 %v827
    %v899 = vunpack.c.l.b16 %v828
    %v900 = vunpack.c.l.b16 %v829
    %v901 = vunpack.c.l.b16 %v830
    %v902 = vunpack.c.l.b16 %v831
    %v903 = vunpack.c.l.b16 %v832
    %v904 = vunpack.c.l.b16 %v833
    %v905 = vunpack.c.l.b16 %v834
    %v906 = vunpack.c.l.b16 %v835
    %v907 = vunpack.c.l.b16 %v836
    %v908 = vunpack.c.l.b16 %v837
    %v909 = vunpack.c.l.b16 %v838
    %v910 = vunpack.c.l.b16 %v839
    %v911 = vunpack.c.l.b16 %v840
    %v912 = vunpack.c.l.b16 %v841
    %v913 = vunpack.c.l.b16 %v842
    %v914 = vunpack.c.l.b16 %v843
    %v915 = vunpack.c.l.b16 %v844
    %v916 = vunpack.c.l.b16 %v845
    %v917 = vunpack.c.l.b16 %v846
    %v918 = vunpack.c.l.b16 %v847
    %v919 = vunpack.c.l.b16 %v848
    %v920 = vunpack.c.l.b16 %v849
    %v921 = vunpack.c.l.b16 %v850
    %v922 = vunpack.c.l.b16 %v851
    %v923 = vunpack.c.l.b16 %v852
    %v924 = vunpack.c.l.b16 %v853
    %v925 = vunpack.c.l.b16 %v854
    %v926 = vunpack.c.l.b16 %v855
    %v927 = vunpack.c.l.b16 %v856
    %v928 = vunpack.c.l.b16 %v857
    %v929 = vunpack.c.l.b16 %v858
    %v930 = vpack.c.b16 %v899, %v898
    %v931 = vpack.c.b16 %v901, %v900
    %v932 = vpack.c.b16 %v903, %v902
    %v933 = vpack.c.b16 %v905, %v904
    %v934 = vpack.c.b16 %v907, %v906
    %v935 = vpack.c.b16 %v909, %v908
    %v936 = vpack.c.b16 %v911, %v910
    %v937 = vpack.c.b16 %v913, %v912
    %v938 = vpack.c.b16 %v915, %v914
    %v939 = vpack.c.b16 %v917, %v916
    %v940 = vpack.c.b16 %v919, %v918
    %v941 = vpack.c.b16 %v921, %v920
    %v942 = vpack.c.b16 %v923, %v922
    %v943 = vpack.c.b16 %v925, %v924
    %v944 = vpack.c.b16 %v927, %v926
    %v945 = vpack.c.b16 %v929, %v928
    %962 = vmatprep.subr.bf16.mxu0 0
    %963 = vmatpush1.bf16.msra.mxu0 %v937
    %964 = vmatprep.subr.bf16.mxu0 0
    %965 = vmatpush1.bf16.msra.mxu0 %v936
    %966 = vmatprep.subr.bf16.mxu0 0
    %967 = vmatpush1.bf16.msra.mxu0 %v935
    %968 = vmatprep.subr.bf16.mxu0 0
    %969 = vmatpush1.bf16.msra.mxu0 %v934
    %970 = vmatprep.subr.bf16.mxu0 0
    %971 = vmatpush1.bf16.msra.mxu0 %v933
    %972 = vmatprep.subr.bf16.mxu0 0
    %973 = vmatpush1.bf16.msra.mxu0 %v932
    %974 = vmatprep.subr.bf16.mxu0 0
    %975 = vmatpush1.bf16.msra.mxu0 %v931
    %976 = vmatprep.subr.bf16.mxu0 0
    %977 = vmatpush1.bf16.msra.mxu0 %v930
    %978 = vmatprep.subr.bf16.mxu0 0
    %979 = vmatpush2.bf16.msra.mxu0 %v945
    %980 = vmatprep.subr.bf16.mxu0 0
    %981 = vmatpush2.bf16.msra.mxu0 %v944
    %982 = vmatprep.subr.bf16.mxu0 0
    %983 = vmatpush2.bf16.msra.mxu0 %v943
    %984 = vmatprep.subr.bf16.mxu0 0
    %985 = vmatpush2.bf16.msra.mxu0 %v942
    %986 = vmatprep.subr.bf16.mxu0 0
    %987 = vmatpush2.bf16.msra.mxu0 %v941
    %988 = vmatprep.subr.bf16.mxu0 0
    %989 = vmatpush2.bf16.msra.mxu0 %v940
    %990 = vmatprep.subr.bf16.mxu0 0
    %991 = vmatpush2.bf16.msra.mxu0 %v939
    %992 = vmatprep.subr.bf16.mxu0 0
    %993 = vmatpush2.bf16.msra.mxu0 %v938
    %994 = vmatprep.mubr.bf16.mxu0 %v826
    %995 = vmatmul.mubr.bf16.gmra.mxu0 %v825
    %v996 = vpop.f32.mrf.mxu0
    %v997 = vadd.f32 %v864, %v996
    %v998 = vpop.f32.mrf.mxu0
    %v999 = vpop.f32.mrf.mxu0
    %v1000 = vpop.f32.mrf.mxu0
    %1001 = vdwg.mxu0
    %v1002 = vmax.f32 %v997, 0.0
    %v1003 = vpack.c.bf16 %v1002, %v1002
    %v1004 = vld [vmem:[%s5] sm:$0xf]
    %v1005 = vld [vmem:[%s5 + $0x4] sm:$0xf]
    %v1006 = vld [vmem:[%s5 + $0x8] sm:$0xf]
    %v1007 = vld [vmem:[%s5 + $0xc] sm:$0xf]
    %v1008 = vld [vmem:[%s5 + $0x10] sm:$0xf]
    %v1009 = vld [vmem:[%s5 + $0x14] sm:$0xf]
    %v1010 = vld [vmem:[%s5 + $0x18] sm:$0xf]
    %v1011 = vld [vmem:[%s5 + $0x1c] sm:$0xf]
    %v1012 = vld [vmem:[%s5 + $0x20] sm:$0xf]
    %v1013 = vld [vmem:[%s5 + $0x24] sm:$0xf]
    %v1014 = vld [vmem:[%s5 + $0x28] sm:$0xf]
    %v1015 = vld [vmem:[%s5 + $0x2c] sm:$0xf]
    %v1016 = vld [vmem:[%s5 + $0x30] sm:$0xf]
    %v1017 = vld [vmem:[%s5 + $0x34] sm:$0xf]
    %v1018 = vld [vmem:[%s5 + $0x38] sm:$0xf]
    %v1019 = vld [vmem:[%s5 + $0x3c] sm:$0xf]
    %v1020 = vld [vmem:[%s6] sm:$0x1]
    %v1022 = vlaneseq
    %v1023 = vshrl.u32 %v1022, 7
    %v1024 = vsub.s32 0, %v1023
    %v1025 = vrot.slane %v1020, %v1024
    %v1043 = vunpack.c.l.b16 %v1004
    %v1044 = vunpack.c.l.b16 %v1005
    %v1045 = vunpack.c.l.b16 %v1006
    %v1046 = vunpack.c.l.b16 %v1007
    %v1047 = vunpack.c.l.b16 %v1008
    %v1048 = vunpack.c.l.b16 %v1009
    %v1049 = vunpack.c.l.b16 %v1010
    %v1050 = vunpack.c.l.b16 %v1011
    %v1051 = vunpack.c.l.b16 %v1012
    %v1052 = vunpack.c.l.b16 %v1013
    %v1053 = vunpack.c.l.b16 %v1014
    %v1054 = vunpack.c.l.b16 %v1015
    %v1055 = vunpack.c.l.b16 %v1016
    %v1056 = vunpack.c.l.b16 %v1017
    %v1057 = vunpack.c.l.b16 %v1018
    %v1058 = vunpack.c.l.b16 %v1019
    %v1059 = vpack.c.b16 %v1044, %v1043
    %v1060 = vpack.c.b16 %v1046, %v1045
    %v1061 = vpack.c.b16 %v1048, %v1047
    %v1062 = vpack.c.b16 %v1050, %v1049
    %v1063 = vpack.c.b16 %v1052, %v1051
    %v1064 = vpack.c.b16 %v1054, %v1053
    %v1065 = vpack.c.b16 %v1056, %v1055
    %v1066 = vpack.c.b16 %v1058, %v1057
    %1075 = vmatprep.subr.bf16.mxu0 0
    %1076 = vmatpush1.bf16.msra.mxu0 %v1066
    %1077 = vmatprep.subr.bf16.mxu0 0
    %1078 = vmatpush1.bf16.msra.mxu0 %v1065
    %1079 = vmatprep.subr.bf16.mxu0 0
    %1080 = vmatpush1.bf16.msra.mxu0 %v1064
    %1081 = vmatprep.subr.bf16.mxu0 0
    %1082 = vmatpush1.bf16.msra.mxu0 %v1063
    %1083 = vmatprep.subr.bf16.mxu0 0
    %1084 = vmatpush1.bf16.msra.mxu0 %v1062
    %1085 = vmatprep.subr.bf16.mxu0 0
    %1086 = vmatpush1.bf16.msra.mxu0 %v1061
    %1087 = vmatprep.subr.bf16.mxu0 0
    %1088 = vmatpush1.bf16.msra.mxu0 %v1060
    %1089 = vmatprep.subr.bf16.mxu0 0
    %1090 = vmatpush1.bf16.msra.mxu0 %v1059
    %1091 = vmatprep.subr.bf16.mxu0 0
    %1092 = vmatpush2.bf16.msra.mxu0 0
    %1093 = vmatprep.subr.bf16.mxu0 0
    %1094 = vmatpush2.bf16.msra.mxu0 0
    %1095 = vmatprep.subr.bf16.mxu0 0
    %1096 = vmatpush2.bf16.msra.mxu0 0
    %1097 = vmatprep.subr.bf16.mxu0 0
    %1098 = vmatpush2.bf16.msra.mxu0 0
    %1099 = vmatprep.subr.bf16.mxu0 0
    %1100 = vmatpush2.bf16.msra.mxu0 0
    %1101 = vmatprep.subr.bf16.mxu0 0
    %1102 = vmatpush2.bf16.msra.mxu0 0
    %1103 = vmatprep.subr.bf16.mxu0 0
    %1104 = vmatpush2.bf16.msra.mxu0 0
    %1105 = vmatprep.subr.bf16.mxu0 0
    %1106 = vmatpush2.bf16.msra.mxu0 0
    %1107 = vmatprep.mubr.bf16.mxu0 0
    %1108 = vmatmul.mubr.bf16.gmra.mxu0 %v1003
    %v1109 = vpop.f32.mrf.mxu0
    %v1110 = vadd.f32 %v1025, %v1109
    %v1111 = vpop.f32.mrf.mxu0
    %v1112 = vpop.f32.mrf.mxu0
    %v1113 = vpop.f32.mrf.mxu0
    %1114 = vdwg.mxu0
    %v1115 = vpack.c.bf16 %v1110, %v1110
    %1116 = vst [vmem:[%s7] sm:$0xf] %v1115
    // Predicated region
    $region34: #{simple_mlp_forward.1} parent=1 // pred_check
      _
    $region35: #{simple_mlp_forward.1} parent=1 // pred_check_branch
      %1118 = sbr.rel (0) target = $region37
    $region36: #{simple_mlp_forward.1} parent=1 // pred_region
      _
    $region37: #{simple_mlp_forward.1} parent=1 // pred_fallthru
      _
    // Predicated region
    $region38: #{simple_mlp_forward.1} parent=1 // pred_check
      _
    $region39: #{simple_mlp_forward.1} parent=1 // pred_check_branch
      %1120 = sbr.rel (0) target = $region41
    $region40: #{simple_mlp_forward.1} parent=1 // pred_region
      _
    $region41: #{simple_mlp_forward.1} parent=1 // pred_fallthru
      _
    %1121 = vsyncpa [#allocation3], 1

</llo_original>
